<compile_context>
chip_gen: v6e
topology: v6e:2x2x1
jax: 0.10.0
libtpu: 0.0.40
codegen_flags: <defaults>
</compile_context>

<pallas_src>
import functools
import math

import jax
import jax.numpy as jnp
import numpy as np
from jax import lax
from jax.experimental import pallas as pl
from jax.experimental.pallas import tpu as pltpu


def eca_kernel(x_ref, w_ref, o_ref, *, k, pad, inv_hw):
    # x_ref / o_ref: (C, HW) tiles (batch dim squeezed), native dtype.
    # w_ref: (k,) f32 conv taps in SMEM.
    C = x_ref.shape[0]

    # --- Global average pool over spatial (lane reduction, f32 accumulate) ---
    y = jnp.sum(x_ref[...], axis=-1, keepdims=True,
                dtype=jnp.float32) * inv_hw                        # (C, 1)

    # --- Zero-padded 1-D channel conv: z[i] = sum_m w[m] * y[i + m - pad] ----
    # Lane-replicate y so the XLU sublane rotate runs on full (8,128) tiles;
    # the XLU slot is otherwise idle here, so the k rolls are effectively free.
    yl = jnp.broadcast_to(y, (C, 128))                             # (C, 128)
    ch = lax.broadcasted_iota(jnp.int32, (C, 1), 0)                # channel idx
    z = jnp.zeros((C, 128), jnp.float32)
    for m in range(k):                              # k is tiny & static (3/5/7)
        sh = (pad - m) % C
        rolled = yl if sh == 0 else pltpu.roll(yl, shift=sh, axis=0)
        src = ch + (m - pad)
        valid = (src >= 0) & (src < C)              # zero-padding edge mask
        z = z + jnp.where(valid, w_ref[m] * rolled, 0.0)

    # All 128 lanes of z are identical -> collapse to (C, 1) and gate.
    s = jax.nn.sigmoid(jnp.max(z, axis=-1, keepdims=True))         # (C, 1) f32

    # --- Scale: broadcast over the lane (HW) axis, store in native dtype -----
    # NOTE: scale is cast to the activation dtype before the multiply (exact
    # for f32; <=~0.4% rel deviation for bf16 vs an all-f32 multiply).
    o_ref[...] = (x_ref[...] * s.astype(x_ref.dtype)).astype(o_ref.dtype)


def eca_channel_attn(x, w):
    B, C, H, W_ = x.shape
    HW = H * W_
    k = int(w.shape[0])
    pad = (k - 1) // 2

    # Lane axis = flattened spatial.  No padding / de-padding: full-extent
    # trailing block dims are exempt from the (8,128) rule, so only the final
    # lane tile of each row gets a masked store inside the kernel.
    xf = x.reshape(B, C, HW)

    itemsize = int(np.dtype(x.dtype).itemsize)
    block_bytes = C * HW * itemsize
    # 2x double-buffered input + 2x output + headroom, clamped safely below the
    # physical per-TensorCore VMEM (64 MiB on v7x, 128 MiB on v5e/v6e).
    try:
        info = pltpu.get_tpu_info()
        phys_vmem = int(getattr(info, "vmem_capacity_bytes", 64 << 20))
    except Exception:
        phys_vmem = 64 << 20
    vmem_cap = (phys_vmem * 3) // 4
    vmem_bytes = int(min(max(4 * block_bytes + (2 << 20), 32 << 20), vmem_cap))
    # TODO(synk): if 4*block_bytes + headroom exceeds vmem_cap (very large C*HW
    # on v7x), add a channel-tiling "parallel" grid axis with a 2*pad halo
    # instead of raising the VMEM limit.

    kernel = functools.partial(eca_kernel, k=k, pad=pad, inv_hw=1.0 / HW)

    out = pl.pallas_call(
        kernel,
        out_shape=jax.ShapeDtypeStruct((B, C, HW), x.dtype),
        grid_spec=pltpu.PrefetchScalarGridSpec(
            num_scalar_prefetch=0,
            grid=(B,),
            in_specs=[
                pl.BlockSpec((None, C, HW), lambda b: (b, 0, 0)),
                pl.BlockSpec(memory_space=pltpu.MemorySpace.SMEM),  # (k,) taps
            ],
            out_specs=pl.BlockSpec((None, C, HW), lambda b: (b, 0, 0)),
        ),
        compiler_params=pltpu.CompilerParams(
            dimension_semantics=("parallel",),
            vmem_limit_bytes=vmem_bytes,
        ),
        cost_estimate=pl.CostEstimate(
            flops=int(2 * B * C * HW + 2 * B * C * k),
            transcendentals=int(B * C),
            bytes_accessed=int(2 * B * C * HW * itemsize),
        ),
    )(xf, w.astype(jnp.float32))

    return out.reshape(B, C, H, W_)


def eca_reference(x, w):
    """Pure-JAX reference matching the PyTorch forward."""
    B, C, H, W = x.shape
    k = w.shape[0]
    pad = (k - 1) // 2
    y = jnp.mean(x, axis=(2, 3))                                       # (B, C)
    yp = jnp.pad(y, ((0, 0), (pad, pad)))
    z = jnp.stack(
        [jnp.sum(yp[:, i:i + k] * w, axis=-1) for i in range(C)], axis=-1)
    s = jax.nn.sigmoid(z)
    return x * s[:, :, None, None]


if __name__ == "__main__":
    B, C, H, W = 2, 8, 16, 16
    gamma, b = 2, 1

    # ECA kernel size from the module's __init__ (C=8 -> k=3).
    k = int(abs((math.log2(C) + b) / gamma))
    if k % 2 == 0:
        k += 1

    key = jax.random.PRNGKey(0)
    kx, kw = jax.random.split(key)
    x = jax.random.normal(kx, (B, C, H, W), dtype=jnp.float32)
    # Deterministic Conv1d(1, 1, k, bias=False) weight, shape (k,).
    bound = 1.0 / math.sqrt(k)
    w = jax.random.uniform(kw, (k,), minval=-bound, maxval=bound,
                           dtype=jnp.float32)

    out = eca_channel_attn(x, w)
    jax.block_until_ready(out)

    ref = eca_reference(x, w)
    np.testing.assert_allclose(np.asarray(out), np.asarray(ref),
                               rtol=1e-5, atol=1e-5)
    print("KERNEL_OK")
</pallas_src>

<mosaic_0001>
module attributes {stable_mosaic.version = 11 : i64} {
  func.func @eca_kernel(%arg0: i32, %arg1: memref<1x8x256xf32, #tpu.memory_space<vmem>>, %arg2: memref<3xf32, #tpu.memory_space<smem>>, %arg3: memref<1x8x256xf32, #tpu.memory_space<vmem>>) attributes {dimension_semantics = [#tpu.dimension_semantics<parallel>], iteration_bounds = array<i64: 2>, scalar_prefetch = 0 : i64, scratch_operands = 0 : i64, tpu.core_type = #tpu.core_type<tc>, window_params = [{transform_indices = @transform_0, window_bounds = array<i64: 1, 8, 256>}, {transform_indices = @transform_1, window_bounds = array<i64: 3>}, {transform_indices = @transform_2, window_bounds = array<i64: 1, 8, 256>}]} {
    %c0 = arith.constant 0 : index
    %c0_0 = arith.constant 0 : index
    %c0_1 = arith.constant 0 : index
    %0 = vector.load %arg1[%c0, %c0_0, %c0_1] : memref<1x8x256xf32, #tpu.memory_space<vmem>>, vector<1x8x256xf32>
    %1 = vector.shape_cast %0 : vector<1x8x256xf32> to vector<8x256xf32>
    %cst = arith.constant dense<0.000000e+00> : vector<8xf32>
    %2 = vector.multi_reduction <add>, %1, %cst [1] : vector<8x256xf32> to vector<8xf32>
    %3 = vector.shape_cast %2 : vector<8xf32> to vector<8x1xf32>
    %cst_2 = arith.constant 3.906250e-03 : f32
    %4 = vector.broadcast %cst_2 : f32 to vector<8x1xf32>
    %5 = arith.mulf %3, %4 : vector<8x1xf32>
    %6 = vector.shape_cast %5 : vector<8x1xf32> to vector<8x1xf32>
    %7 = vector.broadcast %6 : vector<8x1xf32> to vector<8x128xf32>
    %8 = tpu.iota {dimensions = array<i32: 0>} : vector<8x1xi32>
    %cst_3 = arith.constant 0.000000e+00 : f32
    %9 = vector.broadcast %cst_3 : f32 to vector<8x128xf32>
    %c1_i32 = arith.constant 1 : i32
    %10 = tpu.dynamic_rotate %7 by %c1_i32 dim 0 : vector<8x128xf32>, i32 -> vector<8x128xf32>
    %c-1_i32 = arith.constant -1 : i32
    %11 = vector.broadcast %c-1_i32 : i32 to vector<8x1xi32>
    %12 = arith.addi %8, %11 : vector<8x1xi32>
    %c0_i32 = arith.constant 0 : i32
    %13 = vector.broadcast %c0_i32 : i32 to vector<8x1xi32>
    %14 = arith.cmpi sge, %12, %13 : vector<8x1xi32>
    %c8_i32 = arith.constant 8 : i32
    %15 = vector.broadcast %c8_i32 : i32 to vector<8x1xi32>
    %16 = arith.cmpi slt, %12, %15 : vector<8x1xi32>
    %17 = arith.andi %14, %16 : vector<8x1xi1>
    %c0_4 = arith.constant 0 : index
    %18 = memref.load %arg2[%c0_4] : memref<3xf32, #tpu.memory_space<smem>>
    %19 = vector.broadcast %18 : f32 to vector<8x128xf32>
    %20 = arith.mulf %19, %10 : vector<8x128xf32>
    %cst_5 = arith.constant 0.000000e+00 : f32
    %21 = vector.shape_cast %17 : vector<8x1xi1> to vector<8x1xi1>
    %22 = vector.broadcast %21 : vector<8x1xi1> to vector<8x128xi1>
    %23 = vector.broadcast %cst_5 : f32 to vector<8x128xf32>
    %24 = arith.select %22, %20, %23 : vector<8x128xi1>, vector<8x128xf32>
    %25 = arith.addf %9, %24 : vector<8x128xf32>
    %c0_i32_6 = arith.constant 0 : i32
    %26 = vector.broadcast %c0_i32_6 : i32 to vector<8x1xi32>
    %27 = arith.addi %8, %26 : vector<8x1xi32>
    %c0_i32_7 = arith.constant 0 : i32
    %28 = vector.broadcast %c0_i32_7 : i32 to vector<8x1xi32>
    %29 = arith.cmpi sge, %27, %28 : vector<8x1xi32>
    %c8_i32_8 = arith.constant 8 : i32
    %30 = vector.broadcast %c8_i32_8 : i32 to vector<8x1xi32>
    %31 = arith.cmpi slt, %27, %30 : vector<8x1xi32>
    %32 = arith.andi %29, %31 : vector<8x1xi1>
    %c1 = arith.constant 1 : index
    %33 = memref.load %arg2[%c1] : memref<3xf32, #tpu.memory_space<smem>>
    %34 = vector.broadcast %33 : f32 to vector<8x128xf32>
    %35 = arith.mulf %34, %7 : vector<8x128xf32>
    %cst_9 = arith.constant 0.000000e+00 : f32
    %36 = vector.shape_cast %32 : vector<8x1xi1> to vector<8x1xi1>
    %37 = vector.broadcast %36 : vector<8x1xi1> to vector<8x128xi1>
    %38 = vector.broadcast %cst_9 : f32 to vector<8x128xf32>
    %39 = arith.select %37, %35, %38 : vector<8x128xi1>, vector<8x128xf32>
    %40 = arith.addf %25, %39 : vector<8x128xf32>
    %c7_i32 = arith.constant 7 : i32
    %41 = tpu.dynamic_rotate %7 by %c7_i32 dim 0 : vector<8x128xf32>, i32 -> vector<8x128xf32>
    %c1_i32_10 = arith.constant 1 : i32
    %42 = vector.broadcast %c1_i32_10 : i32 to vector<8x1xi32>
    %43 = arith.addi %8, %42 : vector<8x1xi32>
    %c0_i32_11 = arith.constant 0 : i32
    %44 = vector.broadcast %c0_i32_11 : i32 to vector<8x1xi32>
    %45 = arith.cmpi sge, %43, %44 : vector<8x1xi32>
    %c8_i32_12 = arith.constant 8 : i32
    %46 = vector.broadcast %c8_i32_12 : i32 to vector<8x1xi32>
    %47 = arith.cmpi slt, %43, %46 : vector<8x1xi32>
    %48 = arith.andi %45, %47 : vector<8x1xi1>
    %c2 = arith.constant 2 : index
    %49 = memref.load %arg2[%c2] : memref<3xf32, #tpu.memory_space<smem>>
    %50 = vector.broadcast %49 : f32 to vector<8x128xf32>
    %51 = arith.mulf %50, %41 : vector<8x128xf32>
    %cst_13 = arith.constant 0.000000e+00 : f32
    %52 = vector.shape_cast %48 : vector<8x1xi1> to vector<8x1xi1>
    %53 = vector.broadcast %52 : vector<8x1xi1> to vector<8x128xi1>
    %54 = vector.broadcast %cst_13 : f32 to vector<8x128xf32>
    %55 = arith.select %53, %51, %54 : vector<8x128xi1>, vector<8x128xf32>
    %56 = arith.addf %40, %55 : vector<8x128xf32>
    %cst_14 = arith.constant dense<0xFF800000> : vector<8xf32>
    %57 = vector.multi_reduction <maximumf>, %56, %cst_14 [1] : vector<8x128xf32> to vector<8xf32>
    %58 = vector.shape_cast %57 : vector<8xf32> to vector<8x1xf32>
    %59 = arith.negf %58 : vector<8x1xf32>
    %60 = math.exp %59 : vector<8x1xf32>
    %cst_15 = arith.constant 1.000000e+00 : f32
    %61 = vector.broadcast %cst_15 : f32 to vector<8x1xf32>
    %62 = arith.addf %61, %60 : vector<8x1xf32>
    %63 = arith.divf %61, %62 : vector<8x1xf32>
    %c0_16 = arith.constant 0 : index
    %c0_17 = arith.constant 0 : index
    %c0_18 = arith.constant 0 : index
    %64 = vector.load %arg1[%c0_16, %c0_17, %c0_18] : memref<1x8x256xf32, #tpu.memory_space<vmem>>, vector<1x8x256xf32>
    %65 = vector.shape_cast %64 : vector<1x8x256xf32> to vector<8x256xf32>
    %66 = vector.broadcast %63 : vector<8x1xf32> to vector<8x256xf32>
    %67 = arith.mulf %65, %66 : vector<8x256xf32>
    %c0_19 = arith.constant 0 : index
    %c0_20 = arith.constant 0 : index
    %c0_21 = arith.constant 0 : index
    %68 = vector.load %arg3[%c0_19, %c0_20, %c0_21] : memref<1x8x256xf32, #tpu.memory_space<vmem>>, vector<1x8x256xf32>
    %69 = vector.shape_cast %68 : vector<1x8x256xf32> to vector<8x256xf32>
    %70 = vector.shape_cast %67 : vector<8x256xf32> to vector<1x8x256xf32>
    tpu.vector_store %arg3[%c0_19, %c0_20, %c0_21], %70 {strides = array<i32>} : memref<1x8x256xf32, #tpu.memory_space<vmem>>, vector<1x8x256xf32>,
    return
  }
  func.func @transform_0(%arg0: i32) -> (i32, i32, i32) {
    %c0_i32 = arith.constant 0 : i32
    %c0_i32_0 = arith.constant 0 : i32
    %c0_i32_1 = arith.constant 0 : i32
    return %arg0, %c0_i32, %c0_i32_0 : i32, i32, i32
  }
  func.func @transform_1(%arg0: i32) -> i32 {
    %c0_i32 = arith.constant 0 : i32
    %c0_i32_0 = arith.constant 0 : i32
    return %c0_i32 : i32
  }
  func.func @transform_2(%arg0: i32) -> (i32, i32, i32) {
    %c0_i32 = arith.constant 0 : i32
    %c0_i32_0 = arith.constant 0 : i32
    %c0_i32_1 = arith.constant 0 : i32
    return %arg0, %c0_i32, %c0_i32_0 : i32, i32, i32
  }
}

</mosaic_0001>

<llo_original>
// kernel: tpu_custom_call.1
$region0: #{tpu_custom_call.1}
  #allocation0 [shape = 'u32[]', space=smem, size = 0x4, offset = 0x4, fixed_abs, tag = 'smem constant byte address 0x4 - core index']
  #allocation1 [shape = 'u32[144,128]{1,0:T(1,128)}', space=vmem, size = 0x12000, scoped, tag = 'internal scratch']
  %s0 = inlined_call_operand.hbm [shape: f32[2,8,256], index: 0, kind: input, shape index: {}]
  %s1 = inlined_call_operand.vmem [shape: f32[3], index: 1, kind: input, shape index: {}]
  %s2 = inlined_call_operand.hbm [shape: f32[2,8,256], index: 2, kind: output, shape index: {}]
  %s3 = sld [smem:[#allocation0]]
  $region49: #{tpu_custom_call.1} parent=0
    _
  %s5 = ssub.s32 1, %s3
  %s6 = scalar_select 0, %s5, %s3
  $region1: #{tpu_custom_call.1} parent=0
    #allocation2 [shape = 'u8[16384]{0}', space=vmem, size = 0x4000, scoped, tag = 'input window, operand 0']
    #allocation3 [shape = 's32[2]{0}', space=sflag, size = 0x8, scoped, tag = 'scoped memory for tpu_custom_call.1']
    #allocation4 [shape = 's32[2]{0}', space=sflag, size = 0x8, scoped, tag = 'scoped memory for tpu_custom_call.1']
    #allocation5 [shape = 's32[2]{0}', space=sflag, size = 0x8, scoped, tag = 'scoped memory for tpu_custom_call.1']
    #allocation6 [shape = 'u8[512]{0}', space=smem, size = 0x200, scoped, tag = 'input window, operand 1, single buffered']
    #allocation7 [shape = 'u8[16384]{0}', space=vmem, size = 0x4000, scoped, tag = 'output window, operand 0']
    %7 = vsyncpa [#allocation3], 0
    %s8 = scalar_lea.sflag [#allocation3], 1
    %9 = vsyncpa %s8, 0
    %10 = vsyncpa [#allocation5], 0
    %11 = vsyncpa [#allocation4], 0
    %s12 = scalar_lea.sflag [#allocation4], 1
    %13 = vsyncpa %s12, 0
    loop: start=0, step=1, limit=4
    $region2: #{tpu_custom_call.1} parent=1 // loop_pre_header
      _
    $region3: #{tpu_custom_call.1} parent=1 // loop_header
      %s15 = sphi 0, %s19
      %p16 = scmp.ge.s32.totalorder %s15, 4
      %s25 = sphi 0, %s27
      %s28 = sphi 0, %s25
      %s29 = sphi 0, %s28
      %s45 = sphi 0, %s29
      %s49 = sphi 0, %s49
      %s51 = sphi 0, %s49
      %s52 = sphi 0, %s51
      %s66 = sphi 0, %s52
      %s72 = sphi 0, %s74
      %s75 = sphi 0, %s72
      %s76 = sphi 0, %s75
      %s92 = sphi 0, %s76
    $region4: #{tpu_custom_call.1} parent=1 // loop_header_branch
      %18 = sbr.rel (%p16) target = $region8
    $region5: #{tpu_custom_call.1} parent=1 // loop_body
      %s20 = ssub.s32 %s15, 1
      %s21 = ssub.s32 %s15, 2
      %s22 = sadd.s32 %s15, 1
      %s23 = ssub.s32 %s15, %s22
      %p24 = scmp.eq.s32.totalorder %s23, 0
      %s26 = sadd.s32 %s25, 1
      %s27 = scalar_select %p24, %s25, %s26
      %p30 = pneg %p24
      %p31 = scmp.eq.s32.totalorder %s15, 1
      %p32 = por %p30, %p31
      %p33 = scmp.ne.s32.totalorder %s25, %s28
      %p34 = scmp.eq.s32.totalorder %s15, 0
      %p35 = por %p33, %p34
      %p36 = scmp.ne.s32.totalorder %s25, %s28
      %p37 = scmp.eq.s32.totalorder %s20, 1
      %p38 = por %p36, %p37
      %p39 = scmp.ne.s32.totalorder %s28, %s29
      %p40 = scmp.eq.s32.totalorder %s20, 0
      %p41 = por %p39, %p40
      %p42 = scmp.ne.s32.totalorder %s28, %s29
      %p43 = scmp.eq.s32.totalorder %s21, 1
      %p44 = por %p42, %p43
      %p46 = scmp.ne.s32.totalorder %s29, %s45
      %p47 = scmp.eq.s32.totalorder %s21, 0
      %p48 = por %p46, %p47
      %s50 = sadd.s32 %s49, 1
      %p53 = scmp.eq.s32.totalorder %s15, 1
      %p54 = scmp.ne.s32.totalorder %s49, %s51
      %p55 = scmp.eq.s32.totalorder %s15, 0
      %p56 = por %p54, %p55
      %p57 = scmp.ne.s32.totalorder %s49, %s51
      %p58 = scmp.eq.s32.totalorder %s20, 1
      %p59 = por %p57, %p58
      %p60 = scmp.ne.s32.totalorder %s51, %s52
      %p61 = scmp.eq.s32.totalorder %s20, 0
      %p62 = por %p60, %p61
      %p63 = scmp.ne.s32.totalorder %s51, %s52
      %p64 = scmp.eq.s32.totalorder %s21, 1
      %p65 = por %p63, %p64
      %p67 = scmp.ne.s32.totalorder %s52, %s66
      %p68 = scmp.eq.s32.totalorder %s21, 0
      %p69 = por %p67, %p68
      %s70 = ssub.s32 %s15, %s22
      %p71 = scmp.eq.s32.totalorder %s70, 0
      %s73 = sadd.s32 %s72, 1
      %s74 = scalar_select %p71, %s72, %s73
      %p77 = pneg %p71
      %p78 = scmp.eq.s32.totalorder %s15, 1
      %p79 = por %p77, %p78
      %p80 = scmp.ne.s32.totalorder %s72, %s75
      %p81 = scmp.eq.s32.totalorder %s15, 0
      %p82 = por %p80, %p81
      %p83 = scmp.ne.s32.totalorder %s72, %s75
      %p84 = scmp.eq.s32.totalorder %s20, 1
      %p85 = por %p83, %p84
      %p86 = scmp.ne.s32.totalorder %s75, %s76
      %p87 = scmp.eq.s32.totalorder %s20, 0
      %p88 = por %p86, %p87
      %p89 = scmp.ne.s32.totalorder %s75, %s76
      %p90 = scmp.eq.s32.totalorder %s21, 1
      %p91 = por %p89, %p90
      %p93 = scmp.ne.s32.totalorder %s76, %s92
      %p94 = scmp.eq.s32.totalorder %s21, 0
      %p95 = por %p93, %p94
      %p96 = scmp.le.s32.totalorder 1, %s15
      %p97 = scmp.lt.s32.totalorder %s15, 3
      %p98 = pnand %p96, %p97
      %p99 = pneg %p98
      // Predicated region
      $region9: #{tpu_custom_call.1} parent=5 // pred_check
        _
      $region10: #{tpu_custom_call.1} parent=5 // pred_check_branch
        %101 = sbr.rel (%p98) target = $region12
      $region11: #{tpu_custom_call.1} parent=5 // pred_region
        %s102 = ssub.s32 %s15, 1
        // Predicated region
        $region13: #{tpu_custom_call.1} parent=11 // pred_check
          %p103 = pneg %p62
        $region14: #{tpu_custom_call.1} parent=11 // pred_check_branch
          %105 = sbr.rel (%p103) target = $region16
        $region15: #{tpu_custom_call.1} parent=11 // pred_region
          %s107 = ssub.s32 16, 16
          %108 = vsyncadd [#allocation5], %s107
          %s110 = sshll.u32 %s1, 4
          %s111 = int_to_ptr.vmem [resolvable:$true] %s110
          %113 = dma.vmem_to_smem %s111, 16, [#allocation6], [#allocation5]
        $region16: #{tpu_custom_call.1} parent=11 // pred_fallthru
          _
      $region12: #{tpu_custom_call.1} parent=5 // pred_fallthru
        _
      %p114 = scmp.lt.s32.totalorder %s15, 2
      // Predicated region
      $region17: #{tpu_custom_call.1} parent=5 // pred_check
        %p115 = pneg %p114
      $region18: #{tpu_custom_call.1} parent=5 // pred_check_branch
        %117 = sbr.rel (%p115) target = $region20
      $region19: #{tpu_custom_call.1} parent=5 // pred_region
        // Predicated region
        $region21: #{tpu_custom_call.1} parent=19 // pred_check
          %p118 = pneg %p35
        $region22: #{tpu_custom_call.1} parent=19 // pred_check_branch
          %120 = sbr.rel (%p118) target = $region24
        $region23: #{tpu_custom_call.1} parent=19 // pred_region
          %s121 = sand.u32 %s25, 1
          %s122 = scalar_lea.sflag [#allocation3], %s121
          %s123 = sand.u32 %s25, 1
          %s124 = smul.addr %s123, 16
          %s125 = scalar_lea.vmem [#allocation2], %s124
          %s127 = ssub.s32 256, 256
          %128 = vsyncadd %s122, %s127
          %s129 = smul.addr %s15, 2
          %s130 = smul.addr %s129, 128
          %s131 = scalar_lea.hbm %s0, %s130
          %s133 = sshll.u32 %s125, 4
          %s134 = int_to_ptr.vmem [resolvable:$true] %s133
          %136 = dma.hbm_to_vmem [thread:$0]  %s131, 256, %s134, %s122
        $region24: #{tpu_custom_call.1} parent=19 // pred_fallthru
          _
      $region20: #{tpu_custom_call.1} parent=5 // pred_fallthru
        _
      %p137 = scmp.le.s32.totalorder 1, %s15
      %p138 = scmp.lt.s32.totalorder %s15, 3
      %p139 = pnand %p137, %p138
      %p140 = pneg %p139
      // Predicated region
      $region25: #{tpu_custom_call.1} parent=5 // pred_check
        _
      $region26: #{tpu_custom_call.1} parent=5 // pred_check_branch
        %142 = sbr.rel (%p139) target = $region28
      $region27: #{tpu_custom_call.1} parent=5 // pred_region
        %s143 = ssub.s32 %s15, 1
        %s144 = sand.u32 %s28, 1
        %s145 = scalar_lea.sflag [#allocation3], %s144
        %s146 = sand.u32 %s28, 1
        %s147 = smul.addr %s146, 16
        %s148 = scalar_lea.vmem [#allocation2], %s147
        // Predicated region
        $region29: #{tpu_custom_call.1} parent=27 // pred_check
          %p149 = pneg %p41
        $region30: #{tpu_custom_call.1} parent=27 // pred_check_branch
          %151 = sbr.rel (%p149) target = $region32
        $region31: #{tpu_custom_call.1} parent=27 // pred_region
          %152 = dma.done %s145, 256
        $region32: #{tpu_custom_call.1} parent=27 // pred_fallthru
          _
        // Predicated region
        $region33: #{tpu_custom_call.1} parent=27 // pred_check
          %p153 = pneg %p62
        $region34: #{tpu_custom_call.1} parent=27 // pred_check_branch
          %155 = sbr.rel (%p153) target = $region36
        $region35: #{tpu_custom_call.1} parent=27 // pred_region
          %156 = dma.done [#allocation5], 16
        $region36: #{tpu_custom_call.1} parent=27 // pred_fallthru
          _
        %157 = sfence
        %s158 = sand.u32 %s28, 1
        %s159 = scalar_lea.sflag [#allocation3], %s158
        %s160 = sand.u32 %s28, 1
        %s161 = smul.addr %s160, 16
        %s162 = scalar_lea.vmem [#allocation2], %s161
        %p163 = pneg %p41
        %p164 = pneg %p38
        %p165 = pneg %p62
        %p166 = pneg %p59
        %p167 = pneg %p88
        %p168 = pneg %p85
        %s169 = sand.u32 %s75, 1
        %s170 = scalar_lea.sflag [#allocation4], %s169
        %s171 = sand.u32 %s75, 1
        %s172 = smul.addr %s171, 16
        %s173 = scalar_lea.vmem [#allocation7], %s172
        %v174 = vld [vmem:[%s148] sm:$0xff]
        %v175 = vld [vmem:[%s148 + $0x8] sm:$0xff]
        %v176 = vadd.f32 %v174, %v175
        %177 = vadd.xlane.f32.xlu0 %v176
        %v178 = vpop.xlane.xlu0 %177
        %v179 = vmul.f32 %v178, 0.00390625
        %v180 = vlaneseq
        %v181 = vshrl.u32 %v180, 7
        %v182 = vrot.slane %v179, 7
        %v183 = vadd.s32 %v181, 4294967295
        %vm184 = vcmp.ge.s32.totalorder %v183, 0
        %vm185 = vcmp.lt.s32.totalorder %v183, 8
        %vm186 = vmand %vm184, %vm185
        %s187 = sld [smem:[#allocation6]]
        %v188 = vstv %s187
        %v189 = vmul.f32 %v188, %v182
        %v190 = vsel %vm186, 1, 0
        %vm191 = vcmp.eq.s32.totalorder %v190, 1
        %v192 = vsel %vm191, %v189, 0.0
        %v193 = vadd.f32 %v192, 0.0
        %vm194 = vcmp.ge.s32.totalorder %v181, 0
        %vm195 = vcmp.lt.s32.totalorder %v181, 8
        %vm196 = vmand %vm194, %vm195
        %s197 = sld [smem:[#allocation6 + $0x1]]
        %v198 = vstv %s197
        %v199 = vmul.f32 %v198, %v179
        %v200 = vsel %vm196, 1, 0
        %vm201 = vcmp.eq.s32.totalorder %v200, 1
        %v202 = vsel %vm201, %v199, 0.0
        %v203 = vadd.f32 %v193, %v202
        %v204 = vrot.slane %v179, 1
        %v205 = vadd.s32 %v181, 1
        %vm206 = vcmp.ge.s32.totalorder %v205, 0
        %vm207 = vcmp.lt.s32.totalorder %v205, 8
        %vm208 = vmand %vm206, %vm207
        %s209 = sld [smem:[#allocation6 + $0x2]]
        %v210 = vstv %s209
        %v211 = vmul.f32 %v210, %v204
        %v212 = vsel %vm208, 1, 0
        %vm213 = vcmp.eq.s32.totalorder %v212, 1
        %v214 = vsel %vm213, %v211, 0.0
        %v215 = vadd.f32 %v203, %v214
        %216 = vmax.xlane.f32.xlu0 %v215
        %v217 = vpop.xlane.xlu0 %216
        %v218 = vxor.u32 %v217, 2147483648
        %v219 = vmul.f32 %v218, 1.442695
        %v220 = vpow.pop %v219
        %v221 = vadd.f32 %v220, 1.0
        %v222 = vrcp.pop %v221
        %v223 = vmul.f32 1.0, %v222
        %v224 = vmul.f32 %v174, %v223
        %v225 = vmul.f32 %v175, %v223
        %226 = vst [vmem:[%s173] sm:$0xff] %v224
        %227 = vst [vmem:[%s173 + $0x8] sm:$0xff] %v225
        %s228 = sand.u32 %s75, 1
        %s229 = scalar_lea.sflag [#allocation4], %s228
        %s230 = sand.u32 %s75, 1
        %s231 = smul.addr %s230, 16
        %s232 = scalar_lea.vmem [#allocation7], %s231
        // Predicated region
        $region37: #{tpu_custom_call.1} parent=27 // pred_check
          %p233 = pneg %p85
        $region38: #{tpu_custom_call.1} parent=27 // pred_check_branch
          %235 = sbr.rel (%p233) target = $region40
        $region39: #{tpu_custom_call.1} parent=27 // pred_region
          %s237 = ssub.s32 256, 256
          %238 = vsyncadd %s229, %s237
          %s239 = smul.addr %s20, 2
          %s240 = smul.addr %s239, 128
          %s241 = scalar_lea.hbm %s2, %s240
          %s243 = sshll.u32 %s232, 4
          %s244 = int_to_ptr.vmem [resolvable:$true] %s243
          %246 = dma.vmem_to_hbm [thread:$0]  %s244, 256, %s241, %s229
        $region40: #{tpu_custom_call.1} parent=27 // pred_fallthru
          _
      $region28: #{tpu_custom_call.1} parent=5 // pred_fallthru
        _
      %p247 = scmp.le.s32.totalorder 2, %s15
      // Predicated region
      $region41: #{tpu_custom_call.1} parent=5 // pred_check
        %p248 = pneg %p247
      $region42: #{tpu_custom_call.1} parent=5 // pred_check_branch
        %250 = sbr.rel (%p248) target = $region44
      $region43: #{tpu_custom_call.1} parent=5 // pred_region
        %s251 = ssub.s32 %s15, 2
        // Predicated region
        $region45: #{tpu_custom_call.1} parent=43 // pred_check
          %p252 = pneg %p91
        $region46: #{tpu_custom_call.1} parent=43 // pred_check_branch
          %254 = sbr.rel (%p252) target = $region48
        $region47: #{tpu_custom_call.1} parent=43 // pred_region
          %s255 = sand.u32 %s76, 1
          %s256 = scalar_lea.sflag [#allocation4], %s255
          %s257 = sand.u32 %s76, 1
          %s258 = smul.addr %s257, 16
          %s259 = scalar_lea.vmem [#allocation7], %s258
          %260 = dma.done %s256, 256
        $region48: #{tpu_custom_call.1} parent=43 // pred_fallthru
          _
      $region44: #{tpu_custom_call.1} parent=5 // pred_fallthru
        _
    $region6: #{tpu_custom_call.1} parent=1 // loop_footer
      %s19 = sadd.s32 1, %s15
    $region7: #{tpu_custom_call.1} parent=1 // loop_footer_branch
      %14 = sbr.rel target = $region3
    $region8: #{tpu_custom_call.1} parent=1 // loop_exit
      _
    %261 = vsyncpa [#allocation3], 1
    %s262 = scalar_lea.sflag [#allocation3], 1
    %263 = vsyncpa %s262, 1
    %264 = vsyncpa [#allocation4], 1
    %s265 = scalar_lea.sflag [#allocation4], 1
    %266 = vsyncpa %s265, 1
    %267 = vsyncpa [#allocation5], 1
    %s268 = scalar_lea.sflag [#allocation5], 1
    %269 = vsyncpa %s268, 1

</llo_original>
